<compile_context>
chip_gen: v6e
topology: v6e:2x2x1
jax: 0.10.0
libtpu: 0.0.40
codegen_flags: <defaults>
</compile_context>

<pallas_src>
import jax
import jax.numpy as jnp
from jax.experimental import pallas as pl
from jax.experimental.pallas import tpu as pltpu


def _mlp_kernel(x_ref, w1_ref, b1_ref, w2_ref, b2_ref, o_ref):
    """relu(x @ w1 + b1) @ w2 + b2 on one (tb, K) batch tile."""
    x = x_ref[...].astype(jnp.float32)        # (tb, K)
    w1 = w1_ref[...].astype(jnp.float32)      # (K, H)
    b1 = b1_ref[...].astype(jnp.float32)      # (1, H)

    # fc1 as K broadcast FMAs on the VPU (K=4 is far below MXU native depth);
    # the Python loop unrolls at trace time.
    h = b1 + x[:, 0:1] * w1[0:1, :]
    for k in range(1, w1.shape[0]):
        h = h + x[:, k:k + 1] * w1[k:k + 1, :]
    h = jnp.maximum(h, 0.0)                   # (tb, H), f32, never downcast

    # fc2 on the MXU with an f32 accumulator; output block is the real (tb, 3)
    # (masked lane store in VMEM, but only 12 B/row of HBM writeback).
    out = jnp.dot(h, w2_ref[...], preferred_element_type=jnp.float32)
    out = out + b2_ref[...].astype(jnp.float32)
    o_ref[...] = out.astype(o_ref.dtype)


def mlp_forward(x, w1, b1, w2, b2, *, block_b=2048, small_batch=1024):
    """Fused MLP forward: relu(x @ w1 + b1) @ w2 + b2.

    Weights are stored transposed vs. PyTorch nn.Linear, i.e. (in, out).
    """
    B, K = x.shape
    H = w1.shape[1]
    N = w2.shape[1]

    itemsize = jnp.dtype(x.dtype).itemsize
    w_itemsize = jnp.dtype(w1.dtype).itemsize
    cost = pl.CostEstimate(
        flops=2 * B * (K * H + H * N),
        transcendentals=0,
        bytes_accessed=B * (K + N) * itemsize
        + (K * H + H + H * N + N) * w_itemsize,
    )
    out_shape = jax.ShapeDtypeStruct((B, N), x.dtype)

    if B <= small_batch:
        # Small batch: single un-gridded call, whole arrays resident in VMEM,
        # zero per-grid-step pipelining overhead.
        return pl.pallas_call(
            _mlp_kernel, out_shape=out_shape, cost_estimate=cost,
        )(x, w1, b1, w2, b2)

    # Gridded path: batch axis tiled; tb capped so the grid always has >= 2
    # steps (lets "parallel" semantics split work across v7x's 2 TensorCores).
    tb = min(block_b, ((B + 1) // 2 + 7) // 8 * 8)
    grid = (pl.cdiv(B, tb),)   # final block may be partial; Pallas masks it.

    return pl.pallas_call(
        _mlp_kernel,
        out_shape=out_shape,
        grid=grid,
        in_specs=[
            pl.BlockSpec((tb, K), lambda i: (i, 0)),   # x walks the batch axis
            pl.BlockSpec((K, H), lambda i: (0, 0)),    # weights/biases stay
            pl.BlockSpec((1, H), lambda i: (0, 0)),    # resident in VMEM
            pl.BlockSpec((H, N), lambda i: (0, 0)),
            pl.BlockSpec((1, N), lambda i: (0, 0)),
        ],
        out_specs=pl.BlockSpec((tb, N), lambda i: (i, 0)),
        compiler_params=pltpu.CompilerParams(
            dimension_semantics=("parallel",)),
        cost_estimate=cost,
    )(x, w1, b1, w2, b2)


def init_params(key, in_features=4, hidden_units=32, out_features=3):
    """Deterministic init mirroring nn.Linear shapes (stored transposed)."""
    k1, k2, k3, k4 = jax.random.split(key, 4)
    lim1 = 1.0 / jnp.sqrt(jnp.float32(in_features))
    lim2 = 1.0 / jnp.sqrt(jnp.float32(hidden_units))
    w1 = jax.random.uniform(k1, (in_features, hidden_units), jnp.float32,
                            -lim1, lim1)
    b1 = jax.random.uniform(k2, (1, hidden_units), jnp.float32, -lim1, lim1)
    w2 = jax.random.uniform(k3, (hidden_units, out_features), jnp.float32,
                            -lim2, lim2)
    b2 = jax.random.uniform(k4, (1, out_features), jnp.float32, -lim2, lim2)
    return w1, b1, w2, b2


if __name__ == "__main__":
    key = jax.random.PRNGKey(0)
    kp, kx0, kx1, kx2 = jax.random.split(key, 4)

    hidden_units = 32
    w1, b1, w2, b2 = init_params(kp, in_features=4,
                                 hidden_units=hidden_units, out_features=3)

    def reference(x):
        # Independent jnp.dot reference (does NOT reuse the kernel's FMA path).
        h = jnp.maximum(x @ w1 + b1, 0.0)
        return h @ w2 + b2

    # 1) Tiny batch (not a multiple of 8) -> un-gridded whole-array path.
    x0 = jax.random.normal(kx0, (2, 4), jnp.float32)
    o0 = jax.block_until_ready(mlp_forward(x0, w1, b1, w2, b2))
    assert o0.shape == (2, 3)
    assert jnp.allclose(o0, reference(x0), atol=1e-4, rtol=1e-4)

    # 2) Small batch -> still un-gridded.
    x1 = jax.random.normal(kx1, (8, 4), jnp.float32)
    o1 = jax.block_until_ready(mlp_forward(x1, w1, b1, w2, b2))
    assert o1.shape == (8, 3)
    assert jnp.allclose(o1, reference(x1), atol=1e-4, rtol=1e-4)

    # 3) Larger batch, not a tile multiple -> gridded path (tb=2048, grid=(3,))
    #    with resident weights and a masked partial final block.
    x2 = jax.random.normal(kx2, (4100, 4), jnp.float32)
    o2 = jax.block_until_ready(mlp_forward(x2, w1, b1, w2, b2))
    assert o2.shape == (4100, 3)
    assert jnp.allclose(o2, reference(x2), atol=1e-4, rtol=1e-4)

    print("KERNEL_OK")
</pallas_src>

<mosaic_0001>
module attributes {stable_mosaic.version = 11 : i64} {
  func.func @_mlp_kernel(%arg0: memref<2x4xf32, #tpu.memory_space<vmem>>, %arg1: memref<4x32xf32, #tpu.memory_space<vmem>>, %arg2: memref<1x32xf32, #tpu.memory_space<vmem>>, %arg3: memref<32x3xf32, #tpu.memory_space<vmem>>, %arg4: memref<1x3xf32, #tpu.memory_space<vmem>>, %arg5: memref<2x3xf32, #tpu.memory_space<vmem>>) attributes {dimension_semantics = [], scalar_prefetch = 0 : i64, scratch_operands = 0 : i64, tpu.core_type = #tpu.core_type<tc>} {
    %c0 = arith.constant 0 : index
    %c0_0 = arith.constant 0 : index
    %0 = vector.load %arg0[%c0, %c0_0] : memref<2x4xf32, #tpu.memory_space<vmem>>, vector<2x4xf32>
    %c0_1 = arith.constant 0 : index
    %c0_2 = arith.constant 0 : index
    %1 = vector.load %arg1[%c0_1, %c0_2] : memref<4x32xf32, #tpu.memory_space<vmem>>, vector<4x32xf32>
    %c0_3 = arith.constant 0 : index
    %c0_4 = arith.constant 0 : index
    %2 = vector.load %arg2[%c0_3, %c0_4] : memref<1x32xf32, #tpu.memory_space<vmem>>, vector<1x32xf32>
    %3 = vector.extract_strided_slice %0 {offsets = [0, 0], sizes = [2, 1], strides = [1, 1]} : vector<2x4xf32> to vector<2x1xf32>
    %4 = vector.extract_strided_slice %1 {offsets = [0, 0], sizes = [1, 32], strides = [1, 1]} : vector<4x32xf32> to vector<1x32xf32>
    %5 = vector.broadcast %3 : vector<2x1xf32> to vector<2x32xf32>
    %6 = vector.broadcast %4 : vector<1x32xf32> to vector<2x32xf32>
    %7 = arith.mulf %5, %6 : vector<2x32xf32>
    %8 = vector.broadcast %2 : vector<1x32xf32> to vector<2x32xf32>
    %9 = arith.addf %8, %7 : vector<2x32xf32>
    %10 = vector.extract_strided_slice %0 {offsets = [0, 1], sizes = [2, 1], strides = [1, 1]} : vector<2x4xf32> to vector<2x1xf32>
    %11 = vector.extract_strided_slice %1 {offsets = [1, 0], sizes = [1, 32], strides = [1, 1]} : vector<4x32xf32> to vector<1x32xf32>
    %12 = vector.broadcast %10 : vector<2x1xf32> to vector<2x32xf32>
    %13 = vector.broadcast %11 : vector<1x32xf32> to vector<2x32xf32>
    %14 = arith.mulf %12, %13 : vector<2x32xf32>
    %15 = arith.addf %9, %14 : vector<2x32xf32>
    %16 = vector.extract_strided_slice %0 {offsets = [0, 2], sizes = [2, 1], strides = [1, 1]} : vector<2x4xf32> to vector<2x1xf32>
    %17 = vector.extract_strided_slice %1 {offsets = [2, 0], sizes = [1, 32], strides = [1, 1]} : vector<4x32xf32> to vector<1x32xf32>
    %18 = vector.broadcast %16 : vector<2x1xf32> to vector<2x32xf32>
    %19 = vector.broadcast %17 : vector<1x32xf32> to vector<2x32xf32>
    %20 = arith.mulf %18, %19 : vector<2x32xf32>
    %21 = arith.addf %15, %20 : vector<2x32xf32>
    %22 = vector.extract_strided_slice %0 {offsets = [0, 3], sizes = [2, 1], strides = [1, 1]} : vector<2x4xf32> to vector<2x1xf32>
    %23 = vector.extract_strided_slice %1 {offsets = [3, 0], sizes = [1, 32], strides = [1, 1]} : vector<4x32xf32> to vector<1x32xf32>
    %24 = vector.broadcast %22 : vector<2x1xf32> to vector<2x32xf32>
    %25 = vector.broadcast %23 : vector<1x32xf32> to vector<2x32xf32>
    %26 = arith.mulf %24, %25 : vector<2x32xf32>
    %27 = arith.addf %21, %26 : vector<2x32xf32>
    %cst = arith.constant 0.000000e+00 : f32
    %28 = vector.broadcast %cst : f32 to vector<2x32xf32>
    %29 = arith.maximumf %27, %28 : vector<2x32xf32>
    %c0_5 = arith.constant 0 : index
    %c0_6 = arith.constant 0 : index
    %30 = vector.load %arg3[%c0_5, %c0_6] : memref<32x3xf32, #tpu.memory_space<vmem>>, vector<32x3xf32>
    %cst_7 = arith.constant dense<0.000000e+00> : vector<2x3xf32>
    %31 = tpu.matmul %29, %30, %cst_7 {dimension_numbers = #tpu.dot_dimension_numbers<[1], [0], [0], [1], [0, 0, 1, 1], [], []>} : vector<2x32xf32>, vector<32x3xf32>, vector<2x3xf32> -> vector<2x3xf32>
    %c0_8 = arith.constant 0 : index
    %c0_9 = arith.constant 0 : index
    %32 = vector.load %arg4[%c0_8, %c0_9] : memref<1x3xf32, #tpu.memory_space<vmem>>, vector<1x3xf32>
    %33 = vector.broadcast %32 : vector<1x3xf32> to vector<2x3xf32>
    %34 = arith.addf %31, %33 : vector<2x3xf32>
    %c0_10 = arith.constant 0 : index
    %c0_11 = arith.constant 0 : index
    %35 = vector.load %arg5[%c0_10, %c0_11] : memref<2x3xf32, #tpu.memory_space<vmem>>, vector<2x3xf32>
    tpu.vector_store %arg5[%c0_10, %c0_11], %34 {strides = array<i32>} : memref<2x3xf32, #tpu.memory_space<vmem>>, vector<2x3xf32>,
    return
  }
}

</mosaic_0001>

<llo_original>
// kernel: tpu_custom_call.1
$region0: #{tpu_custom_call.1}
  #allocation0 [shape = 'u32[]', space=smem, size = 0x4, offset = 0x4, fixed_abs, tag = 'smem constant byte address 0x4 - core index']
  #allocation1 [shape = 'u32[144,128]{1,0:T(1,128)}', space=vmem, size = 0x12000, scoped, tag = 'internal scratch']
  %s0 = inlined_call_operand.vmem [shape: f32[2,4], index: 0, kind: input, shape index: {}]
  %s1 = inlined_call_operand.vmem [shape: f32[4,32], index: 1, kind: input, shape index: {}]
  %s2 = inlined_call_operand.vmem [shape: f32[1,32], index: 2, kind: input, shape index: {}]
  %s3 = inlined_call_operand.vmem [shape: f32[32,3], index: 3, kind: input, shape index: {}]
  %s4 = inlined_call_operand.vmem [shape: f32[1,3], index: 4, kind: input, shape index: {}]
  %s5 = inlined_call_operand.hbm [shape: f32[2,3], index: 5, kind: output, shape index: {}]
  %s6 = sld [smem:[#allocation0]]
  $region30: #{tpu_custom_call.1} parent=0
    _
  %s8 = ssub.s32 1, %s6
  %s9 = scalar_select 0, %s8, %s6
  $region1: #{tpu_custom_call.1} parent=0
    #allocation2 [shape = 'u8[1024]{0}', space=vmem, size = 0x400, scoped, tag = 'output window, operand 0, single buffered']
    #allocation3 [shape = 's32[1]{0}', space=sflag, size = 0x4, scoped, tag = 'scoped memory for tpu_custom_call.1']
    %10 = vsyncpa [#allocation3], 0
    // Predicated region
    $region2: #{tpu_custom_call.1} parent=1 // pred_check
      _
    $region3: #{tpu_custom_call.1} parent=1 // pred_check_branch
      %12 = sbr.rel (0) target = $region5
    $region4: #{tpu_custom_call.1} parent=1 // pred_region
      _
    $region5: #{tpu_custom_call.1} parent=1 // pred_fallthru
      _
    // Predicated region
    $region6: #{tpu_custom_call.1} parent=1 // pred_check
      _
    $region7: #{tpu_custom_call.1} parent=1 // pred_check_branch
      %14 = sbr.rel (0) target = $region9
    $region8: #{tpu_custom_call.1} parent=1 // pred_region
      _
    $region9: #{tpu_custom_call.1} parent=1 // pred_fallthru
      _
    // Predicated region
    $region10: #{tpu_custom_call.1} parent=1 // pred_check
      _
    $region11: #{tpu_custom_call.1} parent=1 // pred_check_branch
      %16 = sbr.rel (0) target = $region13
    $region12: #{tpu_custom_call.1} parent=1 // pred_region
      _
    $region13: #{tpu_custom_call.1} parent=1 // pred_fallthru
      _
    // Predicated region
    $region14: #{tpu_custom_call.1} parent=1 // pred_check
      _
    $region15: #{tpu_custom_call.1} parent=1 // pred_check_branch
      %18 = sbr.rel (0) target = $region17
    $region16: #{tpu_custom_call.1} parent=1 // pred_region
      _
    $region17: #{tpu_custom_call.1} parent=1 // pred_fallthru
      _
    // Predicated region
    $region18: #{tpu_custom_call.1} parent=1 // pred_check
      _
    $region19: #{tpu_custom_call.1} parent=1 // pred_check_branch
      %20 = sbr.rel (0) target = $region21
    $region20: #{tpu_custom_call.1} parent=1 // pred_region
      _
    $region21: #{tpu_custom_call.1} parent=1 // pred_fallthru
      _
    %v21 = vld [vmem:[%s0] sm:$0x3]
    %v22 = vld [vmem:[%s1] sm:$0xf]
    %v23 = vld [vmem:[%s2] sm:$0x1]
    %25 = vset.pattern.permute.xlu0 0
    %26 = vperm.xlu0 %25, %v21
    %v27 = vpop.permute.xlu0 %26
    %v29 = vlaneseq
    %v30 = vshrl.u32 %v29, 7
    %v31 = vsub.s32 0, %v30
    %v32 = vrot.slane %v22, %v31
    %v33 = vmul.f32 %v27, %v32
    %v35 = vlaneseq
    %v36 = vshrl.u32 %v35, 7
    %v37 = vsub.s32 0, %v36
    %v38 = vrot.slane %v23, %v37
    %v40 = vadd.f32 %v38, %v33
    %41 = vset.pattern.permute.xlu0 1
    %42 = vperm.xlu0 %41, %v21
    %v43 = vpop.permute.xlu0 %42
    %v45 = vlaneseq
    %v46 = vshrl.u32 %v45, 7
    %v47 = vsub.s32 1, %v46
    %v48 = vrot.slane %v22, %v47
    %v49 = vmul.f32 %v43, %v48
    %v50 = vadd.f32 %v40, %v49
    %51 = vset.pattern.permute.xlu0 2
    %52 = vperm.xlu0 %51, %v21
    %v53 = vpop.permute.xlu0 %52
    %v55 = vlaneseq
    %v56 = vshrl.u32 %v55, 7
    %v57 = vsub.s32 2, %v56
    %v58 = vrot.slane %v22, %v57
    %v59 = vmul.f32 %v53, %v58
    %v60 = vadd.f32 %v50, %v59
    %61 = vset.pattern.permute.xlu0 3
    %62 = vperm.xlu0 %61, %v21
    %v63 = vpop.permute.xlu0 %62
    %v65 = vlaneseq
    %v66 = vshrl.u32 %v65, 7
    %v67 = vsub.s32 3, %v66
    %v68 = vrot.slane %v22, %v67
    %v69 = vmul.f32 %v63, %v68
    %v70 = vadd.f32 %v60, %v69
    %v71 = vmax.f32 %v70, 0.0
    %v72 = vld [vmem:[%s3] sm:$0xff]
    %v73 = vld [vmem:[%s3 + $0x8] sm:$0xff]
    %v74 = vld [vmem:[%s3 + $0x10] sm:$0xff]
    %v75 = vld [vmem:[%s3 + $0x18] sm:$0xff]
    %v76 = vld [vmem:[%s4] sm:$0x1]
    %v78 = vlaneseq
    %v79 = vshrl.u32 %v78, 7
    %v80 = vsub.s32 0, %v79
    %v81 = vrot.slane %v76, %v80
    %vm83 = vcmask 261120
    %v85 = vsel %vm83, %v71, 0
    %87 = vmatprep.subr.mxu0 0.0
    %88 = vmatpush1.msra.mxu0 0.0
    %89 = vmatprep.subr.mxu0 0.0
    %90 = vmatpush1.msra.mxu0 0.0
    %91 = vmatprep.subr.mxu0 0.0
    %92 = vmatpush1.msra.mxu0 0.0
    %93 = vmatprep.subr.mxu0 0.0
    %94 = vmatpush1.msra.mxu0 0.0
    %95 = vmatprep.subr.mxu0 0.0
    %96 = vmatpush1.msra.mxu0 0.0
    %97 = vmatprep.subr.mxu0 0.0
    %98 = vmatpush1.msra.mxu0 0.0
    %99 = vmatprep.subr.mxu0 0.0
    %100 = vmatpush1.msra.mxu0 0.0
    %101 = vmatprep.subr.mxu0 0.0
    %102 = vmatpush1.msra.mxu0 0.0
    %103 = vmatprep.subr.mxu0 0.0
    %104 = vmatpush1.msra.mxu0 0.0
    %105 = vmatprep.subr.mxu0 0.0
    %106 = vmatpush1.msra.mxu0 0.0
    %107 = vmatprep.subr.mxu0 0.0
    %108 = vmatpush1.msra.mxu0 0.0
    %109 = vmatprep.subr.mxu0 0.0
    %110 = vmatpush1.msra.mxu0 0.0
    %111 = vmatprep.subr.mxu0 0.0
    %112 = vmatpush1.msra.mxu0 %v75
    %113 = vmatprep.subr.mxu0 0.0
    %114 = vmatpush1.msra.mxu0 %v74
    %115 = vmatprep.subr.mxu0 0.0
    %116 = vmatpush1.msra.mxu0 %v73
    %117 = vmatprep.subr.mxu0 0.0
    %118 = vmatpush1.msra.mxu0 %v72
    %119 = vmatprep.subr.mxu0 0.0
    %120 = vmatpush2.msra.mxu0 0.0
    %121 = vmatprep.subr.mxu0 0.0
    %122 = vmatpush2.msra.mxu0 0.0
    %123 = vmatprep.subr.mxu0 0.0
    %124 = vmatpush2.msra.mxu0 0.0
    %125 = vmatprep.subr.mxu0 0.0
    %126 = vmatpush2.msra.mxu0 0.0
    %127 = vmatprep.subr.mxu0 0.0
    %128 = vmatpush2.msra.mxu0 0.0
    %129 = vmatprep.subr.mxu0 0.0
    %130 = vmatpush2.msra.mxu0 0.0
    %131 = vmatprep.subr.mxu0 0.0
    %132 = vmatpush2.msra.mxu0 0.0
    %133 = vmatprep.subr.mxu0 0.0
    %134 = vmatpush2.msra.mxu0 0.0
    %135 = vmatprep.subr.mxu0 0.0
    %136 = vmatpush2.msra.mxu0 0.0
    %137 = vmatprep.subr.mxu0 0.0
    %138 = vmatpush2.msra.mxu0 0.0
    %139 = vmatprep.subr.mxu0 0.0
    %140 = vmatpush2.msra.mxu0 0.0
    %141 = vmatprep.subr.mxu0 0.0
    %142 = vmatpush2.msra.mxu0 0.0
    %143 = vmatprep.subr.mxu0 0.0
    %144 = vmatpush2.msra.mxu0 0.0
    %145 = vmatprep.subr.mxu0 0.0
    %146 = vmatpush2.msra.mxu0 0.0
    %147 = vmatprep.subr.mxu0 0.0
    %148 = vmatpush2.msra.mxu0 0.0
    %149 = vmatprep.subr.mxu0 0.0
    %150 = vmatpush2.msra.mxu0 0.0
    %151 = vmatprep.mubr.f32.mxu0 0.0
    %152 = vmatmul.mubr.f32.gmra.mxu0 %v85
    %v153 = vpop.f32.mrf.mxu0
    %v154 = vadd.f32 %v81, %v153
    %v155 = vpop.f32.mrf.mxu0
    %156 = vdwg.mxu0
    %vm157 = vcmask 17408
    %158 = vst.msk [vmem:[#allocation2] sm:$0x3] %vm157, %v154
    // Predicated region
    $region22: #{tpu_custom_call.1} parent=1 // pred_check
      _
    $region23: #{tpu_custom_call.1} parent=1 // pred_check_branch
      %160 = sbr.rel (0) target = $region25
    $region24: #{tpu_custom_call.1} parent=1 // pred_region
      %s162 = ssub.s32 32, 32
      %163 = vsyncadd [#allocation3], %s162
      %s165 = sshll.u32 [#allocation2], 4
      %s166 = int_to_ptr.vmem [resolvable:$true] %s165
      %168 = dma.vmem_to_hbm [thread:$0]  %s166, 32, %s5, [#allocation3]
    $region25: #{tpu_custom_call.1} parent=1 // pred_fallthru
      _
    // Predicated region
    $region26: #{tpu_custom_call.1} parent=1 // pred_check
      _
    $region27: #{tpu_custom_call.1} parent=1 // pred_check_branch
      %170 = sbr.rel (0) target = $region29
    $region28: #{tpu_custom_call.1} parent=1 // pred_region
      %171 = dma.done [#allocation3], 32
    $region29: #{tpu_custom_call.1} parent=1 // pred_fallthru
      _
    %172 = vsyncpa [#allocation3], 1

</llo_original>
